<compile_context>
chip_gen: v6e
topology: v6e:2x2x1
jax: 0.10.0
libtpu: 0.0.40
codegen_flags: <defaults>
</compile_context>

<pallas_src>
import jax
import jax.numpy as jnp
from jax.experimental import pallas as pl
from jax.experimental.pallas import tpu as pltpu


def _mish_kernel(x_ref, o_ref):
    xf = x_ref[...].astype(jnp.float32)
    # tanh(softplus(x)) = ((1+e)^2 - 1) / ((1+e)^2 + 1) = n / (n + 2),
    # with e = exp(x), n = e*(e+2).  Clamp x at 20 (PyTorch softplus
    # threshold); at the clamp n ~= 2.4e17 (finite in f32) and n/(n+2) == 1.
    e = jnp.exp(jnp.minimum(xf, 20.0))
    n = e * (e + 2.0)
    out = xf * (n / (n + 2.0))
    o_ref[...] = out.astype(o_ref.dtype)


def mish_pallas(feats, *, block_rows=1024, lanes=512):
    """Elementwise Mish on an (N, C) feature matrix via a Pallas TPU kernel.

    The input is flattened and presented to the kernel as a lane-dense
    (rows, lanes) slab so stores are unmasked full-width vst's and tiles are
    MiB-scale instead of KiB-scale.
    """
    orig_shape = feats.shape
    dtype = feats.dtype

    flat = feats.reshape(-1)
    n_elem = flat.shape[0]

    # Pad so the 2-D lane-dense view has sublane count divisible by 8 and
    # lane count exactly `lanes` (a multiple of 128).
    row_quant = 8 * lanes
    padded = pl.cdiv(n_elem, row_quant) * row_quant
    if padded != n_elem:
        flat = jnp.pad(flat, (0, padded - n_elem))
    rows = padded // lanes
    x2d = flat.reshape(rows, lanes)

    # rows is a multiple of 8; block_rows (default 1024) is too, so the block
    # shape stays (8,128)-aligned even for tiny inputs.
    blk = min(block_rows, rows)
    grid = (pl.cdiv(rows, blk),)

    out2d = pl.pallas_call(
        _mish_kernel,
        out_shape=jax.ShapeDtypeStruct((rows, lanes), dtype),
        grid=grid,
        in_specs=[pl.BlockSpec((blk, lanes), lambda i: (i, 0))],
        out_specs=pl.BlockSpec((blk, lanes), lambda i: (i, 0)),
        compiler_params=pltpu.CompilerParams(
            dimension_semantics=("parallel",)
        ),
    )(x2d)

    return out2d.reshape(-1)[:n_elem].reshape(orig_shape)


def minkowski_mish_forward(sparse_input):
    """Mirror of MinkowskiMish.forward.

    `sparse_input` is a dict standing in for an ME.SparseTensor:
      {"F": (N, C) features, "coords": (N, D+1) int coordinates}
    Returns a new dict with transformed features and the same coordinates
    (analogous to re-wrapping with the same coords_key / coords_manager).
    """
    # TODO(synk): ME.SparseTensor coords_key/coords_manager bookkeeping has no
    # array compute; coordinates are simply carried through.
    out_feats = mish_pallas(sparse_input["F"])
    return {"F": out_feats, "coords": sparse_input["coords"]}


if __name__ == "__main__":
    key = jax.random.PRNGKey(0)
    k_f, k_c = jax.random.split(key)

    # Small synthetic sparse tensor: N active points, C channels, 3D coords + batch.
    N, C = 200, 16
    feats = jax.random.normal(k_f, (N, C), dtype=jnp.float32) * 3.0
    coords = jax.random.randint(k_c, (N, 4), minval=0, maxval=32, dtype=jnp.int32)
    sparse_input = {"F": feats, "coords": coords}

    out = minkowski_mish_forward(sparse_input)
    out_feats = jax.block_until_ready(out["F"])

    # Reference check in plain JAX with PyTorch F.softplus semantics
    # (beta=1, threshold=20) followed by tanh and the elementwise product.
    sp_ref = jnp.where(feats > 20.0, feats,
                       jnp.log1p(jnp.exp(jnp.minimum(feats, 20.0))))
    ref = jnp.tanh(sp_ref) * feats

    assert out_feats.shape == feats.shape
    assert out_feats.dtype == feats.dtype
    assert jnp.allclose(out_feats, ref, atol=1e-5, rtol=1e-5)
    assert jnp.array_equal(out["coords"], coords)

    print("KERNEL_OK")
</pallas_src>

<mosaic_0001>
module attributes {stable_mosaic.version = 11 : i64} {
  func.func @_mish_kernel(%arg0: i32, %arg1: memref<8x512xf32, #tpu.memory_space<vmem>>, %arg2: memref<8x512xf32, #tpu.memory_space<vmem>>) attributes {dimension_semantics = [#tpu.dimension_semantics<parallel>], iteration_bounds = array<i64: 1>, scalar_prefetch = 0 : i64, scratch_operands = 0 : i64, tpu.core_type = #tpu.core_type<tc>, window_params = [{transform_indices = @transform_0, window_bounds = array<i64: 8, 512>}, {transform_indices = @transform_1, window_bounds = array<i64: 8, 512>}]} {
    %c0 = arith.constant 0 : index
    %c0_0 = arith.constant 0 : index
    %0 = vector.load %arg1[%c0, %c0_0] : memref<8x512xf32, #tpu.memory_space<vmem>>, vector<8x512xf32>
    %cst = arith.constant 2.000000e+01 : f32
    %1 = vector.broadcast %cst : f32 to vector<8x512xf32>
    %2 = arith.minimumf %0, %1 : vector<8x512xf32>
    %3 = math.exp %2 : vector<8x512xf32>
    %cst_1 = arith.constant 2.000000e+00 : f32
    %4 = vector.broadcast %cst_1 : f32 to vector<8x512xf32>
    %5 = arith.addf %3, %4 : vector<8x512xf32>
    %6 = arith.mulf %3, %5 : vector<8x512xf32>
    %cst_2 = arith.constant 2.000000e+00 : f32
    %7 = vector.broadcast %cst_2 : f32 to vector<8x512xf32>
    %8 = arith.addf %6, %7 : vector<8x512xf32>
    %9 = arith.divf %6, %8 : vector<8x512xf32>
    %10 = arith.mulf %0, %9 : vector<8x512xf32>
    %c0_3 = arith.constant 0 : index
    %c0_4 = arith.constant 0 : index
    %11 = vector.load %arg2[%c0_3, %c0_4] : memref<8x512xf32, #tpu.memory_space<vmem>>, vector<8x512xf32>
    tpu.vector_store %arg2[%c0_3, %c0_4], %10 {strides = array<i32>} : memref<8x512xf32, #tpu.memory_space<vmem>>, vector<8x512xf32>,
    return
  }
  func.func @transform_0(%arg0: i32) -> (i32, i32) {
    %c0_i32 = arith.constant 0 : i32
    %c0_i32_0 = arith.constant 0 : i32
    return %arg0, %c0_i32 : i32, i32
  }
  func.func @transform_1(%arg0: i32) -> (i32, i32) {
    %c0_i32 = arith.constant 0 : i32
    %c0_i32_0 = arith.constant 0 : i32
    return %arg0, %c0_i32 : i32, i32
  }
}

</mosaic_0001>

<llo_original>
// kernel: tpu_custom_call.1
$region0: #{tpu_custom_call.1}
  #allocation0 [shape = 'u32[]', space=smem, size = 0x4, offset = 0x4, fixed_abs, tag = 'smem constant byte address 0x4 - core index']
  #allocation1 [shape = 'u32[144,128]{1,0:T(1,128)}', space=vmem, size = 0x12000, scoped, tag = 'internal scratch']
  %s0 = inlined_call_operand.hbm [shape: f32[8,512], index: 0, kind: input, shape index: {}]
  %s1 = inlined_call_operand.hbm [shape: f32[8,512], index: 1, kind: output, shape index: {}]
  %s2 = sld [smem:[#allocation0]]
  $region18: #{tpu_custom_call.1} parent=0
    _
  %s4 = ssub.s32 1, %s2
  %s5 = scalar_select 0, %s4, %s2
  $region1: #{tpu_custom_call.1} parent=0
    #allocation2 [shape = 'u8[16384]{0}', space=vmem, size = 0x4000, scoped, tag = 'input window, operand 0, single buffered']
    #allocation3 [shape = 's32[1]{0}', space=sflag, size = 0x4, scoped, tag = 'scoped memory for tpu_custom_call.1']
    #allocation4 [shape = 's32[1]{0}', space=sflag, size = 0x4, scoped, tag = 'scoped memory for tpu_custom_call.1']
    #allocation5 [shape = 'u8[16384]{0}', space=vmem, size = 0x4000, scoped, tag = 'output window, operand 0, single buffered']
    %6 = vsyncpa [#allocation3], 0
    %7 = vsyncpa [#allocation4], 0
    // Predicated region
    $region2: #{tpu_custom_call.1} parent=1 // pred_check
      _
    $region3: #{tpu_custom_call.1} parent=1 // pred_check_branch
      %9 = sbr.rel (0) target = $region5
    $region4: #{tpu_custom_call.1} parent=1 // pred_region
      %s11 = ssub.s32 512, 512
      %12 = vsyncadd [#allocation3], %s11
      %s14 = sshll.u32 [#allocation2], 4
      %s15 = int_to_ptr.vmem [resolvable:$true] %s14
      %17 = dma.hbm_to_vmem [thread:$0]  %s0, 512, %s15, [#allocation3]
    $region5: #{tpu_custom_call.1} parent=1 // pred_fallthru
      _
    // Predicated region
    $region6: #{tpu_custom_call.1} parent=1 // pred_check
      _
    $region7: #{tpu_custom_call.1} parent=1 // pred_check_branch
      %19 = sbr.rel (0) target = $region9
    $region8: #{tpu_custom_call.1} parent=1 // pred_region
      %20 = dma.done [#allocation3], 512
    $region9: #{tpu_custom_call.1} parent=1 // pred_fallthru
      _
    %v21 = vld [vmem:[#allocation2] sm:$0xff]
    %v22 = vld [vmem:[#allocation2 + $0x8] sm:$0xff]
    %v23 = vld [vmem:[#allocation2 + $0x10] sm:$0xff]
    %v24 = vld [vmem:[#allocation2 + $0x18] sm:$0xff]
    %v25 = vmin.f32 %v21, 20.0
    %v26 = vmin.f32 %v22, 20.0
    %v27 = vmin.f32 %v23, 20.0
    %v28 = vmin.f32 %v24, 20.0
    %v29 = vmul.f32 %v25, 1.442695
    %v30 = vpow.pop %v29
    %v31 = vmul.f32 %v26, 1.442695
    %v32 = vpow.pop %v31
    %v33 = vmul.f32 %v27, 1.442695
    %v34 = vpow.pop %v33
    %v35 = vmul.f32 %v28, 1.442695
    %v36 = vpow.pop %v35
    %v37 = vadd.f32 %v30, 2.0
    %v38 = vadd.f32 %v32, 2.0
    %v39 = vadd.f32 %v34, 2.0
    %v40 = vadd.f32 %v36, 2.0
    %v41 = vmul.f32 %v30, %v37
    %v42 = vmul.f32 %v32, %v38
    %v43 = vmul.f32 %v34, %v39
    %v44 = vmul.f32 %v36, %v40
    %v45 = vadd.f32 %v41, 2.0
    %v46 = vadd.f32 %v42, 2.0
    %v47 = vadd.f32 %v43, 2.0
    %v48 = vadd.f32 %v44, 2.0
    %v49 = vrcp.pop %v45
    %v50 = vmul.f32 %v41, %v49
    %v51 = vrcp.pop %v46
    %v52 = vmul.f32 %v42, %v51
    %v53 = vrcp.pop %v47
    %v54 = vmul.f32 %v43, %v53
    %v55 = vrcp.pop %v48
    %v56 = vmul.f32 %v44, %v55
    %v57 = vmul.f32 %v21, %v50
    %v58 = vmul.f32 %v22, %v52
    %v59 = vmul.f32 %v23, %v54
    %v60 = vmul.f32 %v24, %v56
    %61 = vst [vmem:[#allocation5] sm:$0xff] %v57
    %62 = vst [vmem:[#allocation5 + $0x8] sm:$0xff] %v58
    %63 = vst [vmem:[#allocation5 + $0x10] sm:$0xff] %v59
    %64 = vst [vmem:[#allocation5 + $0x18] sm:$0xff] %v60
    // Predicated region
    $region10: #{tpu_custom_call.1} parent=1 // pred_check
      _
    $region11: #{tpu_custom_call.1} parent=1 // pred_check_branch
      %66 = sbr.rel (0) target = $region13
    $region12: #{tpu_custom_call.1} parent=1 // pred_region
      %s68 = ssub.s32 512, 512
      %69 = vsyncadd [#allocation4], %s68
      %s71 = sshll.u32 [#allocation5], 4
      %s72 = int_to_ptr.vmem [resolvable:$true] %s71
      %74 = dma.vmem_to_hbm [thread:$0]  %s72, 512, %s1, [#allocation4]
    $region13: #{tpu_custom_call.1} parent=1 // pred_fallthru
      _
    // Predicated region
    $region14: #{tpu_custom_call.1} parent=1 // pred_check
      _
    $region15: #{tpu_custom_call.1} parent=1 // pred_check_branch
      %76 = sbr.rel (0) target = $region17
    $region16: #{tpu_custom_call.1} parent=1 // pred_region
      %77 = dma.done [#allocation4], 512
    $region17: #{tpu_custom_call.1} parent=1 // pred_fallthru
      _
    %78 = vsyncpa [#allocation3], 1
    %79 = vsyncpa [#allocation4], 1

</llo_original>
